<compile_context>
chip_gen: v7x
topology: tpu7x:2x2x1
jax: 0.10.0
libtpu: 0.0.40
codegen_flags: <defaults>
</compile_context>

<pallas_src>
import jax
import jax.numpy as jnp
from jax import lax
from jax.experimental import pallas as pl
from jax.experimental.pallas import tpu as pltpu

IN_FEATURES = 3
OUT_FEATURES = 8


def _linear_gelu_kernel(xt_ref, wt_ref, b_ref, ot_ref):
    xt = xt_ref[...]          # (3, TB)   batch on the lane axis
    wt = wt_ref[...]          # (8, 3)    torch layout: weight[out, in]
    b = b_ref[...]            # (8, 1)

    # Unrolled K=3 FMA on the VPU (MXU would run at <0.2% occupancy here):
    # v1[f, n] = sum_k wt[f, k] * xt[k, n] + b[f]
    v1 = (wt[:, 0:1] * xt[0:1, :]
          + wt[:, 1:2] * xt[1:2, :]
          + wt[:, 2:3] * xt[2:3, :]
          + b)                                   # (8, TB), f32

    # exact-erf GELU, exactly as written in the PyTorch forward
    v2 = v1 * 0.5
    v3 = v1 * 0.7071067811865476
    v4 = lax.erf(v3)
    v5 = v4 + 1.0
    v6 = v2 * v5
    ot_ref[...] = v6.astype(ot_ref.dtype)


def _round_up(x, m):
    return ((x + m - 1) // m) * m


def linear_gelu(x, weight, bias, *, tb_max=8192):
    """x: (B, 3) f32, weight: (8, 3) f32 (torch (out, in) layout), bias: (8,) f32.

    Returns (B, 8) f32 == gelu_erf(x @ weight.T + bias).
    """
    B = x.shape[0]
    assert x.shape[1] == IN_FEATURES
    assert weight.shape == (OUT_FEATURES, IN_FEATURES)

    # Pad the batch to a lane-friendly multiple and pick the batch tile.
    Bp = _round_up(B, 128)
    if Bp <= tb_max:
        TB = Bp
    else:
        TB = tb_max
        Bp = _round_up(B, TB)
    grid = Bp // TB

    # Lane-dense slabs: batch on the last (128-lane) axis.
    xt = jnp.pad(x.T, ((0, 0), (0, Bp - B)))              # (3, Bp)
    wt = weight                                            # (8, 3)
    bt = bias.reshape(OUT_FEATURES, 1)                     # (8, 1)

    yt = pl.pallas_call(
        _linear_gelu_kernel,
        out_shape=jax.ShapeDtypeStruct((OUT_FEATURES, Bp), jnp.float32),
        grid=(grid,),
        in_specs=[
            pl.BlockSpec((IN_FEATURES, TB), lambda i: (0, i)),        # x tile
            pl.BlockSpec((OUT_FEATURES, IN_FEATURES), lambda i: (0, 0)),  # W resident
            pl.BlockSpec((OUT_FEATURES, 1), lambda i: (0, 0)),        # b resident
        ],
        out_specs=pl.BlockSpec((OUT_FEATURES, TB), lambda i: (0, i)),
        compiler_params=pltpu.CompilerParams(
            dimension_semantics=("parallel",)),
    )(xt, wt, bt)

    # Back to the module's (B, 8) layout; drop the batch padding.
    return yt[:, :B].T


def reference(x, weight, bias):
    v1 = x @ weight.T + bias
    v2 = v1 * 0.5
    v3 = v1 * 0.7071067811865476
    v4 = lax.erf(v3)
    return v2 * (v4 + 1.0)


if __name__ == "__main__":
    key = jax.random.PRNGKey(0)
    kx, kw, kb, kx2 = jax.random.split(key, 4)

    # Synthetic parameters for nn.Linear(3, 8, bias=True), torch (out, in) layout.
    weight = jax.random.normal(kw, (OUT_FEATURES, IN_FEATURES), dtype=jnp.float32) * 0.5
    bias = jax.random.normal(kb, (OUT_FEATURES,), dtype=jnp.float32) * 0.1

    # Case 1: the module's example input, torch.randn(1, 3).
    x2 = jax.random.normal(kx, (1, IN_FEATURES), dtype=jnp.float32)
    out = jax.block_until_ready(linear_gelu(x2, weight, bias))
    ref = reference(x2, weight, bias)
    assert out.shape == (1, OUT_FEATURES)
    assert jnp.allclose(out, ref, atol=1e-5, rtol=1e-5), (out, ref)

    # Case 2: a small ragged batch with a tiny tile, to exercise the batch
    # grid (grid > 1) and the padding/slicing path.
    xb = jax.random.normal(kx2, (300, IN_FEATURES), dtype=jnp.float32)
    outb = jax.block_until_ready(linear_gelu(xb, weight, bias, tb_max=128))
    refb = reference(xb, weight, bias)
    assert outb.shape == (300, OUT_FEATURES)
    assert jnp.allclose(outb, refb, atol=1e-5, rtol=1e-5)

    print("KERNEL_OK")
</pallas_src>

<mosaic_0001>
module attributes {stable_mosaic.version = 11 : i64} {
  func.func @_linear_gelu_kernel(%arg0: i32, %arg1: memref<3x128xf32, #tpu.memory_space<vmem>>, %arg2: memref<8x3xf32, #tpu.memory_space<vmem>>, %arg3: memref<8x1xf32, #tpu.memory_space<vmem>>, %arg4: memref<8x128xf32, #tpu.memory_space<vmem>>) attributes {dimension_semantics = [#tpu.dimension_semantics<parallel>], iteration_bounds = array<i64: 1>, scalar_prefetch = 0 : i64, scratch_operands = 0 : i64, tpu.core_type = #tpu.core_type<tc>, window_params = [{transform_indices = @transform_0, window_bounds = array<i64: 3, 128>}, {pipeline_mode = #tpu.pipeline_mode<synchronous>, transform_indices = @transform_1, window_bounds = array<i64: 8, 3>}, {pipeline_mode = #tpu.pipeline_mode<synchronous>, transform_indices = @transform_2, window_bounds = array<i64: 8, 1>}, {transform_indices = @transform_3, window_bounds = array<i64: 8, 128>}]} {
    %c0 = arith.constant 0 : index
    %c0_0 = arith.constant 0 : index
    %0 = vector.load %arg1[%c0, %c0_0] : memref<3x128xf32, #tpu.memory_space<vmem>>, vector<3x128xf32>
    %c0_1 = arith.constant 0 : index
    %c0_2 = arith.constant 0 : index
    %1 = vector.load %arg2[%c0_1, %c0_2] : memref<8x3xf32, #tpu.memory_space<vmem>>, vector<8x3xf32>
    %c0_3 = arith.constant 0 : index
    %c0_4 = arith.constant 0 : index
    %2 = vector.load %arg3[%c0_3, %c0_4] : memref<8x1xf32, #tpu.memory_space<vmem>>, vector<8x1xf32>
    %3 = vector.extract_strided_slice %1 {offsets = [0, 0], sizes = [8, 1], strides = [1, 1]} : vector<8x3xf32> to vector<8x1xf32>
    %4 = vector.extract_strided_slice %0 {offsets = [0, 0], sizes = [1, 128], strides = [1, 1]} : vector<3x128xf32> to vector<1x128xf32>
    %5 = vector.broadcast %3 : vector<8x1xf32> to vector<8x128xf32>
    %6 = vector.broadcast %4 : vector<1x128xf32> to vector<8x128xf32>
    %7 = arith.mulf %5, %6 : vector<8x128xf32>
    %8 = vector.extract_strided_slice %1 {offsets = [0, 1], sizes = [8, 1], strides = [1, 1]} : vector<8x3xf32> to vector<8x1xf32>
    %9 = vector.extract_strided_slice %0 {offsets = [1, 0], sizes = [1, 128], strides = [1, 1]} : vector<3x128xf32> to vector<1x128xf32>
    %10 = vector.broadcast %8 : vector<8x1xf32> to vector<8x128xf32>
    %11 = vector.broadcast %9 : vector<1x128xf32> to vector<8x128xf32>
    %12 = arith.mulf %10, %11 : vector<8x128xf32>
    %13 = arith.addf %7, %12 : vector<8x128xf32>
    %14 = vector.extract_strided_slice %1 {offsets = [0, 2], sizes = [8, 1], strides = [1, 1]} : vector<8x3xf32> to vector<8x1xf32>
    %15 = vector.extract_strided_slice %0 {offsets = [2, 0], sizes = [1, 128], strides = [1, 1]} : vector<3x128xf32> to vector<1x128xf32>
    %16 = vector.broadcast %14 : vector<8x1xf32> to vector<8x128xf32>
    %17 = vector.broadcast %15 : vector<1x128xf32> to vector<8x128xf32>
    %18 = arith.mulf %16, %17 : vector<8x128xf32>
    %19 = arith.addf %13, %18 : vector<8x128xf32>
    %20 = vector.broadcast %2 : vector<8x1xf32> to vector<8x128xf32>
    %21 = arith.addf %19, %20 : vector<8x128xf32>
    %cst = arith.constant 5.000000e-01 : f32
    %22 = vector.broadcast %cst : f32 to vector<8x128xf32>
    %23 = arith.mulf %21, %22 : vector<8x128xf32>
    %cst_5 = arith.constant 0.707106769 : f32
    %24 = vector.broadcast %cst_5 : f32 to vector<8x128xf32>
    %25 = arith.mulf %21, %24 : vector<8x128xf32>
    %26 = math.erf %25 : vector<8x128xf32>
    %cst_6 = arith.constant 1.000000e+00 : f32
    %27 = vector.broadcast %cst_6 : f32 to vector<8x128xf32>
    %28 = arith.addf %26, %27 : vector<8x128xf32>
    %29 = arith.mulf %23, %28 : vector<8x128xf32>
    %c0_7 = arith.constant 0 : index
    %c0_8 = arith.constant 0 : index
    %30 = vector.load %arg4[%c0_7, %c0_8] : memref<8x128xf32, #tpu.memory_space<vmem>>, vector<8x128xf32>
    tpu.vector_store %arg4[%c0_7, %c0_8], %29 {strides = array<i32>} : memref<8x128xf32, #tpu.memory_space<vmem>>, vector<8x128xf32>,
    return
  }
  func.func @transform_0(%arg0: i32) -> (i32, i32) {
    %c0_i32 = arith.constant 0 : i32
    %c0_i32_0 = arith.constant 0 : i32
    return %c0_i32, %arg0 : i32, i32
  }
  func.func @transform_1(%arg0: i32) -> (i32, i32) {
    %c0_i32 = arith.constant 0 : i32
    %c0_i32_0 = arith.constant 0 : i32
    %c0_i32_1 = arith.constant 0 : i32
    return %c0_i32, %c0_i32_0 : i32, i32
  }
  func.func @transform_2(%arg0: i32) -> (i32, i32) {
    %c0_i32 = arith.constant 0 : i32
    %c0_i32_0 = arith.constant 0 : i32
    %c0_i32_1 = arith.constant 0 : i32
    return %c0_i32, %c0_i32_0 : i32, i32
  }
  func.func @transform_3(%arg0: i32) -> (i32, i32) {
    %c0_i32 = arith.constant 0 : i32
    %c0_i32_0 = arith.constant 0 : i32
    return %c0_i32, %arg0 : i32, i32
  }
}

</mosaic_0001>

<llo_original>
// kernel: tpu_custom_call.1
$region0: #{tpu_custom_call.1}
  #allocation0 [shape = 'u32[]', space=smem, size = 0x4, offset = 0x4, fixed_abs, tag = 'smem constant byte address 0x4 - core index']
  #allocation1 [shape = 'u32[144,128]{1,0:T(1,128)}', space=vmem, size = 0x12000, scoped, tag = 'internal scratch']
  %s0 = inlined_call_operand.vmem [shape: f32[3,128], index: 0, kind: input, shape index: {}]
  %s1 = inlined_call_operand.vmem [shape: f32[8,3], index: 1, kind: input, shape index: {}]
  %s2 = inlined_call_operand.vmem [shape: f32[8,1], index: 2, kind: input, shape index: {}]
  %s3 = inlined_call_operand.hbm [shape: f32[8,128], index: 3, kind: output, shape index: {}]
  %s4 = sld [smem:[#allocation0]]
  $region22: #{tpu_custom_call.1} parent=0
    _
  %s6 = ssub.s32 1, %s4
  %s7 = scalar_select 0, %s6, %s4
  $region1: #{tpu_custom_call.1} parent=0
    #allocation2 [shape = 'u8[4096]{0}', space=vmem, size = 0x1000, scoped, tag = 'output window, operand 0, single buffered']
    #allocation3 [shape = 's32[1]{0}', space=sflag, size = 0x4, scoped, tag = 'scoped memory for tpu_custom_call.1']
    %8 = vsyncpa [#allocation3], 0
    // Predicated region
    $region2: #{tpu_custom_call.1} parent=1 // pred_check
      _
    $region3: #{tpu_custom_call.1} parent=1 // pred_check_branch
      %10 = sbr.rel (0) target = $region5
    $region4: #{tpu_custom_call.1} parent=1 // pred_region
      _
    $region5: #{tpu_custom_call.1} parent=1 // pred_fallthru
      _
    // Predicated region
    $region6: #{tpu_custom_call.1} parent=1 // pred_check
      _
    $region7: #{tpu_custom_call.1} parent=1 // pred_check_branch
      %12 = sbr.rel (0) target = $region9
    $region8: #{tpu_custom_call.1} parent=1 // pred_region
      _
    $region9: #{tpu_custom_call.1} parent=1 // pred_fallthru
      _
    // Predicated region
    $region10: #{tpu_custom_call.1} parent=1 // pred_check
      _
    $region11: #{tpu_custom_call.1} parent=1 // pred_check_branch
      %14 = sbr.rel (0) target = $region13
    $region12: #{tpu_custom_call.1} parent=1 // pred_region
      _
    $region13: #{tpu_custom_call.1} parent=1 // pred_fallthru
      _
    %v15 = vld [vmem:[%s0] sm:$0x7]
    %v16 = vld [vmem:[%s1] sm:$0xff]
    %v17 = vld [vmem:[%s2] sm:$0xff]
    %19 = vset.pattern.permute.xlu0 0
    %20 = vperm.xlu0 %19, %v16
    %v21 = vpop.permute.xlu0 %20
    %v23 = vlaneseq
    %v24 = vshrl.u32 %v23, 7
    %v25 = vsub.s32 0, %v24
    %v26 = vrot.slane %v15, %v25
    %v27 = vmul.f32 %v21, %v26
    %28 = vset.pattern.permute.xlu0 1
    %29 = vperm.xlu0 %28, %v16
    %v30 = vpop.permute.xlu0 %29
    %v32 = vlaneseq
    %v33 = vshrl.u32 %v32, 7
    %v34 = vsub.s32 1, %v33
    %v35 = vrot.slane %v15, %v34
    %v36 = vmul.f32 %v30, %v35
    %v37 = vadd.f32 %v27, %v36
    %38 = vset.pattern.permute.xlu0 2
    %39 = vperm.xlu0 %38, %v16
    %v40 = vpop.permute.xlu0 %39
    %v42 = vlaneseq
    %v43 = vshrl.u32 %v42, 7
    %v44 = vsub.s32 2, %v43
    %v45 = vrot.slane %v15, %v44
    %v46 = vmul.f32 %v40, %v45
    %v47 = vadd.f32 %v37, %v46
    %49 = vset.pattern.permute.xlu0 0
    %50 = vperm.xlu0 %49, %v17
    %v51 = vpop.permute.xlu0 %50
    %v53 = vadd.f32 %v47, %v51
    %v54 = vmul.f32 %v53, 0.5
    %v55 = vmul.f32 %v53, 0.70710677
    %v56 = verf.f32.pop %v55
    %v57 = vadd.f32 %v56, 1.0
    %v58 = vmul.f32 %v54, %v57
    %59 = vst [vmem:[#allocation2] sm:$0xff] %v58
    // Predicated region
    $region14: #{tpu_custom_call.1} parent=1 // pred_check
      _
    $region15: #{tpu_custom_call.1} parent=1 // pred_check_branch
      %61 = sbr.rel (0) target = $region17
    $region16: #{tpu_custom_call.1} parent=1 // pred_region
      %s63 = ssub.s32 128, 128
      %64 = vsyncadd [#allocation3], %s63
      %s66 = sshll.u32 [#allocation2], 4
      %s67 = int_to_ptr.vmem [resolvable:$true] %s66
      %69 = dma.vmem_to_hbm [thread:$0]  %s67, 128, %s3, [#allocation3]
    $region17: #{tpu_custom_call.1} parent=1 // pred_fallthru
      _
    // Predicated region
    $region18: #{tpu_custom_call.1} parent=1 // pred_check
      _
    $region19: #{tpu_custom_call.1} parent=1 // pred_check_branch
      %71 = sbr.rel (0) target = $region21
    $region20: #{tpu_custom_call.1} parent=1 // pred_region
      %72 = dma.done [#allocation3], 128
    $region21: #{tpu_custom_call.1} parent=1 // pred_fallthru
      _
    %73 = vsyncpa [#allocation3], 1

</llo_original>
